<compile_context>
chip_gen: v5e
topology: v5e:2x2
jax: 0.10.0
libtpu: 0.0.40
codegen_flags: <defaults>
</compile_context>

<pallas_src>
import functools

import jax
import jax.numpy as jnp
from jax import lax
from jax.experimental import pallas as pl
from jax.experimental.pallas import tpu as pltpu


def _upsample2x_kernel(x_ref, w_ref, b_ref, m_ref, o_ref, *, W, HW, Bt):
    # x_ref : (Bt, Cin, HW)        flat images (row-major i*W + j), unpadded
    # w_ref : (4*Cout, 4*Cin)      rows = [ee,eo,oe,oo] x Cout, cols = [x00,x01,x10,x11] x Cin
    # b_ref : (4*Cout, 1)
    # m_ref : (3, HW)              [col_ok (j<W-1), row_ok (i<H-1), col_ok*row_ok]
    # o_ref : (Bt, 4*Cout, HW)
    wmat = w_ref[...]                                   # (4*Cout, 4*Cin), hoisted
    bias = jnp.broadcast_to(b_ref[...], (w_ref.shape[0], HW))   # hoisted out of the loop
    col_ok = m_ref[0:1, :]                              # (1, HW)
    row_ok = m_ref[1:2, :]
    cr_ok = m_ref[2:3, :]

    def body(b, carry):
        x = x_ref[b]                                    # (Cin, HW)
        # Circular lane shifts; wrapped columns land exactly where the masks are 0,
        # so no zero-padded tail is needed.
        x01 = jnp.concatenate([x[:, 1:], x[:, :1]], axis=1) * col_ok       # x[i,   j+1]
        x10 = jnp.concatenate([x[:, W:], x[:, :W]], axis=1) * row_ok       # x[i+1, j  ]
        x11 = jnp.concatenate([x[:, W + 1:], x[:, :W + 1]], axis=1) * cr_ok  # x[i+1, j+1]
        xs = jnp.concatenate([x, x01, x10, x11], axis=0)                    # (4*Cin, HW)
        y = jnp.dot(wmat, xs, preferred_element_type=jnp.float32) + bias    # one MXU push
        o_ref[b] = y.astype(o_ref.dtype)                                    # lane-dense store
        return carry

    lax.fori_loop(0, Bt, body, 0, unroll=True)


def _pick_block_batch(n, max_bt=8):
    """Largest divisor of n that is <= min(max_bt, n//2): big blocks, but >=2 grid steps."""
    target = min(max_bt, max(1, n // 2))
    for bt in range(target, 0, -1):
        if n % bt == 0:
            return bt
    return 1


def conv_transpose_2x_pallas(x_nchw, weight, bias):
    """ConvTranspose2d(in_ch, out_ch, kernel_size=3, stride=2, padding=1, output_padding=1).

    x_nchw : (N, Cin, H, W)    float32
    weight : (Cin, Cout, 3, 3) (PyTorch ConvTranspose2d weight layout)
    bias   : (Cout,)
    returns: (N, Cout, 2H, 2W)
    """
    N, Cin, H, W = x_nchw.shape
    Cout = weight.shape[1]
    HW = H * W

    Bt = _pick_block_batch(N)
    assert N % Bt == 0

    x_flat = x_nchw.reshape(N, Cin, HW)                 # free (contiguous) reshape

    # Fused per-parity / per-shift weight tile (derivation: oh=2*ih-1+kh, ow=2*iw-1+kw).
    def tapT(kh, kw):
        return jnp.transpose(weight[:, :, kh, kw])      # (Cout, Cin)

    Z = jnp.zeros((Cout, Cin), weight.dtype)
    wfull = jnp.concatenate([                           # rows: [ee, eo, oe, oo]
        jnp.concatenate([tapT(1, 1), Z,          Z,          Z         ], axis=1),
        jnp.concatenate([tapT(1, 2), tapT(1, 0), Z,          Z         ], axis=1),
        jnp.concatenate([tapT(2, 1), Z,          tapT(0, 1), Z         ], axis=1),
        jnp.concatenate([tapT(2, 2), tapT(2, 0), tapT(0, 2), tapT(0, 0)], axis=1),
    ], axis=0)                                          # (4*Cout, 4*Cin)

    bbig = jnp.tile(bias, 4).reshape(4 * Cout, 1)       # (4*Cout, 1)

    cols = jnp.arange(HW) % W
    rows = jnp.arange(HW) // W
    col_ok = (cols != W - 1).astype(x_nchw.dtype)
    row_ok = (rows != H - 1).astype(x_nchw.dtype)
    masks = jnp.stack([col_ok, row_ok, col_ok * row_ok], axis=0)   # (3, HW)

    kernel = functools.partial(_upsample2x_kernel, W=W, HW=HW, Bt=Bt)

    out_big = pl.pallas_call(
        kernel,
        out_shape=jax.ShapeDtypeStruct((N, 4 * Cout, HW), x_nchw.dtype),
        grid_spec=pltpu.PrefetchScalarGridSpec(
            num_scalar_prefetch=0,
            grid=(N // Bt,),                            # Bt images per step
            in_specs=[
                pl.BlockSpec((Bt, Cin, HW), lambda g: (g, 0, 0)),
                pl.BlockSpec((4 * Cout, 4 * Cin), lambda g: (0, 0)),   # resident
                pl.BlockSpec((4 * Cout, 1), lambda g: (0, 0)),         # resident
                pl.BlockSpec((3, HW), lambda g: (0, 0)),               # resident
            ],
            out_specs=pl.BlockSpec((Bt, 4 * Cout, HW), lambda g: (g, 0, 0)),
        ),
        compiler_params=pltpu.CompilerParams(
            dimension_semantics=("parallel",)),          # batch sharded over TCs (v7x)
    )(x_flat, wfull, bbig, masks)

    # Parity interleave back to NCHW (see TODO at top of file):
    # (N, [ph,pw,co], [i,j]) -> (N, co, 2i+ph, 2j+pw)
    out = out_big.reshape(N, 2, 2, Cout, H, W)
    out = jnp.transpose(out, (0, 3, 4, 1, 5, 2)).reshape(N, Cout, 2 * H, 2 * W)
    return out


def conv_transpose_ref(x_nchw, weight, bias):
    """Pure-JAX reference for nn.ConvTranspose2d(k=3, s=2, p=1, output_padding=1)."""
    w_flip = jnp.flip(weight, axis=(2, 3))              # flip spatially
    w_oihw = jnp.transpose(w_flip, (1, 0, 2, 3))        # (Cout, Cin, kh, kw)
    out = jax.lax.conv_general_dilated(
        x_nchw, w_oihw,
        window_strides=(1, 1),
        padding=((1, 2), (1, 2)),                       # (k-1-p, k-1-p+output_padding)
        lhs_dilation=(2, 2),
        dimension_numbers=("NCHW", "OIHW", "NCHW"))
    return out + bias[None, :, None, None]


if __name__ == "__main__":
    # Module config: SwinIRUpsample(in_channels=4, out_channels=8)
    N, Cin, Cout, H, W = 2, 4, 8, 16, 16

    key = jax.random.PRNGKey(0)
    kx, kw, kb = jax.random.split(key, 3)
    x = jax.random.normal(kx, (N, Cin, H, W), dtype=jnp.float32)
    # Deterministic synthetic params (PyTorch ConvTranspose2d weight shape: Cin,Cout,kH,kW)
    weight = jax.random.normal(kw, (Cin, Cout, 3, 3), dtype=jnp.float32) * 0.1
    bias = jax.random.normal(kb, (Cout,), dtype=jnp.float32) * 0.1

    fwd = jax.jit(conv_transpose_2x_pallas)

    out = jax.block_until_ready(fwd(x, weight, bias))
    ref = conv_transpose_ref(x, weight, bias)
    assert out.shape == (N, Cout, 2 * H, 2 * W), out.shape
    assert jnp.allclose(out, ref, atol=1e-4, rtol=1e-4), float(jnp.max(jnp.abs(out - ref)))

    # Also exercise the multi-image-per-step path (Bt > 1).
    x8 = jax.random.normal(jax.random.PRNGKey(1), (8, Cin, H, W), dtype=jnp.float32)
    out8 = jax.block_until_ready(fwd(x8, weight, bias))
    ref8 = conv_transpose_ref(x8, weight, bias)
    assert jnp.allclose(out8, ref8, atol=1e-4, rtol=1e-4), float(jnp.max(jnp.abs(out8 - ref8)))

    print("KERNEL_OK")
</pallas_src>

<mosaic_0001>
module attributes {stable_mosaic.version = 11 : i64} {
  func.func @_upsample2x_kernel(%arg0: i32, %arg1: memref<1x4x256xf32, #tpu.memory_space<vmem>>, %arg2: memref<32x16xf32, #tpu.memory_space<vmem>>, %arg3: memref<32x1xf32, #tpu.memory_space<vmem>>, %arg4: memref<3x256xf32, #tpu.memory_space<vmem>>, %arg5: memref<1x32x256xf32, #tpu.memory_space<vmem>>) attributes {dimension_semantics = [#tpu.dimension_semantics<parallel>], iteration_bounds = array<i64: 2>, scalar_prefetch = 0 : i64, scratch_operands = 0 : i64, tpu.core_type = #tpu.core_type<tc>, window_params = [{transform_indices = @transform_0, window_bounds = array<i64: 1, 4, 256>}, {pipeline_mode = #tpu.pipeline_mode<synchronous>, transform_indices = @transform_1, window_bounds = array<i64: 32, 16>}, {pipeline_mode = #tpu.pipeline_mode<synchronous>, transform_indices = @transform_2, window_bounds = array<i64: 32, 1>}, {pipeline_mode = #tpu.pipeline_mode<synchronous>, transform_indices = @transform_3, window_bounds = array<i64: 3, 256>}, {transform_indices = @transform_4, window_bounds = array<i64: 1, 32, 256>}]} {
    %c0 = arith.constant 0 : index
    %c0_0 = arith.constant 0 : index
    %0 = vector.load %arg2[%c0, %c0_0] : memref<32x16xf32, #tpu.memory_space<vmem>>, vector<32x16xf32>
    %c0_1 = arith.constant 0 : index
    %c0_2 = arith.constant 0 : index
    %1 = vector.load %arg3[%c0_1, %c0_2] : memref<32x1xf32, #tpu.memory_space<vmem>>, vector<32x1xf32>
    %2 = vector.shape_cast %1 : vector<32x1xf32> to vector<32x1xf32>
    %3 = vector.broadcast %2 : vector<32x1xf32> to vector<32x256xf32>
    %c0_3 = arith.constant 0 : index
    %c0_4 = arith.constant 0 : index
    %4 = vector.load %arg4[%c0_3, %c0_4] : memref<3x256xf32, #tpu.memory_space<vmem>>, vector<1x256xf32>
    %c1 = arith.constant 1 : index
    %c0_5 = arith.constant 0 : index
    %5 = vector.load %arg4[%c1, %c0_5] : memref<3x256xf32, #tpu.memory_space<vmem>>, vector<1x256xf32>
    %c2 = arith.constant 2 : index
    %c0_6 = arith.constant 0 : index
    %6 = vector.load %arg4[%c2, %c0_6] : memref<3x256xf32, #tpu.memory_space<vmem>>, vector<1x256xf32>
    %c0_i32 = arith.constant 0 : i32
    %7 = arith.index_cast %c0_i32 : i32 to index
    %c0_7 = arith.constant 0 : index
    %c0_8 = arith.constant 0 : index
    %8 = vector.load %arg1[%7, %c0_7, %c0_8] : memref<1x4x256xf32, #tpu.memory_space<vmem>>, vector<1x4x256xf32>
    %9 = vector.shape_cast %8 : vector<1x4x256xf32> to vector<4x256xf32>
    %10 = vector.extract_strided_slice %9 {offsets = [0, 1], sizes = [4, 255], strides = [1, 1]} : vector<4x256xf32> to vector<4x255xf32>
    %11 = vector.extract_strided_slice %9 {offsets = [0, 0], sizes = [4, 1], strides = [1, 1]} : vector<4x256xf32> to vector<4x1xf32>
    %12 = tpu.concatenate %10, %11 in 1 : vector<4x255xf32>, vector<4x1xf32> -> vector<4x256xf32>
    %13 = vector.broadcast %4 : vector<1x256xf32> to vector<4x256xf32>
    %14 = arith.mulf %12, %13 : vector<4x256xf32>
    %15 = vector.extract_strided_slice %9 {offsets = [0, 16], sizes = [4, 240], strides = [1, 1]} : vector<4x256xf32> to vector<4x240xf32>
    %16 = vector.extract_strided_slice %9 {offsets = [0, 0], sizes = [4, 16], strides = [1, 1]} : vector<4x256xf32> to vector<4x16xf32>
    %17 = tpu.concatenate %15, %16 in 1 : vector<4x240xf32>, vector<4x16xf32> -> vector<4x256xf32>
    %18 = vector.broadcast %5 : vector<1x256xf32> to vector<4x256xf32>
    %19 = arith.mulf %17, %18 : vector<4x256xf32>
    %20 = vector.extract_strided_slice %9 {offsets = [0, 17], sizes = [4, 239], strides = [1, 1]} : vector<4x256xf32> to vector<4x239xf32>
    %21 = vector.extract_strided_slice %9 {offsets = [0, 0], sizes = [4, 17], strides = [1, 1]} : vector<4x256xf32> to vector<4x17xf32>
    %22 = tpu.concatenate %20, %21 in 1 : vector<4x239xf32>, vector<4x17xf32> -> vector<4x256xf32>
    %23 = vector.broadcast %6 : vector<1x256xf32> to vector<4x256xf32>
    %24 = arith.mulf %22, %23 : vector<4x256xf32>
    %25 = tpu.concatenate %9, %14, %19, %24 in 0 : vector<4x256xf32>, vector<4x256xf32>, vector<4x256xf32>, vector<4x256xf32> -> vector<16x256xf32>
    %cst = arith.constant dense<0.000000e+00> : vector<32x256xf32>
    %26 = tpu.matmul %0, %25, %cst {dimension_numbers = #tpu.dot_dimension_numbers<[1], [0], [0], [1], [0, 0, 1, 1], [], []>} : vector<32x16xf32>, vector<16x256xf32>, vector<32x256xf32> -> vector<32x256xf32>
    %27 = arith.addf %26, %3 : vector<32x256xf32>
    %28 = arith.index_cast %c0_i32 : i32 to index
    %c0_9 = arith.constant 0 : index
    %c0_10 = arith.constant 0 : index
    %29 = vector.load %arg5[%28, %c0_9, %c0_10] : memref<1x32x256xf32, #tpu.memory_space<vmem>>, vector<1x32x256xf32>
    %30 = vector.shape_cast %29 : vector<1x32x256xf32> to vector<32x256xf32>
    %31 = vector.shape_cast %27 : vector<32x256xf32> to vector<1x32x256xf32>
    tpu.vector_store %arg5[%28, %c0_9, %c0_10], %31 {strides = array<i32>} : memref<1x32x256xf32, #tpu.memory_space<vmem>>, vector<1x32x256xf32>,
    %c1_i32 = arith.constant 1 : i32
    return
  }
  func.func @transform_0(%arg0: i32) -> (i32, i32, i32) {
    %c0_i32 = arith.constant 0 : i32
    %c0_i32_0 = arith.constant 0 : i32
    %c0_i32_1 = arith.constant 0 : i32
    return %arg0, %c0_i32, %c0_i32_0 : i32, i32, i32
  }
  func.func @transform_1(%arg0: i32) -> (i32, i32) {
    %c0_i32 = arith.constant 0 : i32
    %c0_i32_0 = arith.constant 0 : i32
    %c0_i32_1 = arith.constant 0 : i32
    return %c0_i32, %c0_i32_0 : i32, i32
  }
  func.func @transform_2(%arg0: i32) -> (i32, i32) {
    %c0_i32 = arith.constant 0 : i32
    %c0_i32_0 = arith.constant 0 : i32
    %c0_i32_1 = arith.constant 0 : i32
    return %c0_i32, %c0_i32_0 : i32, i32
  }
  func.func @transform_3(%arg0: i32) -> (i32, i32) {
    %c0_i32 = arith.constant 0 : i32
    %c0_i32_0 = arith.constant 0 : i32
    %c0_i32_1 = arith.constant 0 : i32
    return %c0_i32, %c0_i32_0 : i32, i32
  }
  func.func @transform_4(%arg0: i32) -> (i32, i32, i32) {
    %c0_i32 = arith.constant 0 : i32
    %c0_i32_0 = arith.constant 0 : i32
    %c0_i32_1 = arith.constant 0 : i32
    return %arg0, %c0_i32, %c0_i32_0 : i32, i32, i32
  }
}

</mosaic_0001>

<llo_original>
// kernel: tile.8
$region0: #{tile.8}
  #allocation0 [shape = 's32[1]{0}', space=sflag, size = 0x4, scoped, tag = 'scoped memory for tile.8']
  %s0 = inlined_call_operand.vmem [shape: f32[8], index: 0, kind: input, shape index: {}]
  %s1 = inlined_call_operand.vmem [shape: f32[4,8], index: 1, kind: output, shape index: {}]
  // Predicated region
  $region2: #{tile.8} parent=0 // pred_check
    _
  $region3: #{tile.8} parent=0 // pred_check_branch
    %3 = sbr.rel (0) target = $region5
  $region4: #{tile.8} parent=0 // pred_region
    _
  $region5: #{tile.8} parent=0 // pred_fallthru
    _
  %v4 = vld [vmem:[%s0] ss:$0 sm:$0xff]
  %5 = vst [vmem:[%s1] sm:$0xf] %v4

// kernel: tile.0
$region0: #{tile.0}
  %s0 = inlined_call_operand.vmem [shape: f32[4,8], index: 0, kind: input, shape index: {}]
  %s1 = inlined_call_operand.vmem [shape: f32[32,1], index: 1, kind: output, shape index: {}]
  $region1: #{tile.0} parent=0
    #allocation0 [shape = 'u8[4096]{0}', space=vmem, size = 0x1000, scoped, tag = 'scoped mem for input reshape']
    %s3 = ssub.s32 16, 1
    %v4 = vld [vmem:[%s0] sm:%s3]
    %5 = vst [vmem:[#allocation0] sm:%s3] %v4
    %v6 = vld [vmem:[#allocation0] sm:$0xf]
    %vm7 = vcmask 7168
    %8 = vst.msk [vmem:[%s1] ss:$8 sm:$0xf] %vm7, %v6
    %v9 = vld [vmem:[#allocation0] sm:$0xf]
    %10 = vrot.lane.b32.xlu0 %v9, 127
    %v11 = vpop.permute.xlu0 %10
    %vm12 = vcmask 7168
    %s13 = scalar_lea.vmem %s1, 1
    %14 = vst.msk [vmem:[%s13] ss:$8 sm:$0xf] %vm12, %v11
    %v15 = vld [vmem:[#allocation0] sm:$0xf]
    %16 = vrot.lane.b32.xlu0 %v15, 126
    %v17 = vpop.permute.xlu0 %16
    %vm18 = vcmask 7168
    %s19 = scalar_lea.vmem %s1, 2
    %20 = vst.msk [vmem:[%s19] ss:$8 sm:$0xf] %vm18, %v17
    %v21 = vld [vmem:[#allocation0] sm:$0xf]
    %22 = vrot.lane.b32.xlu0 %v21, 125
    %v23 = vpop.permute.xlu0 %22
    %vm24 = vcmask 7168
    %s25 = scalar_lea.vmem %s1, 3
    %26 = vst.msk [vmem:[%s25] ss:$8 sm:$0xf] %vm24, %v23
    %v27 = vld [vmem:[#allocation0] sm:$0xf]
    %28 = vrot.lane.b32.xlu0 %v27, 124
    %v29 = vpop.permute.xlu0 %28
    %vm30 = vcmask 7168
    %s31 = scalar_lea.vmem %s1, 4
    %32 = vst.msk [vmem:[%s31] ss:$8 sm:$0xf] %vm30, %v29
    %v33 = vld [vmem:[#allocation0] sm:$0xf]
    %34 = vrot.lane.b32.xlu0 %v33, 123
    %v35 = vpop.permute.xlu0 %34
    %vm36 = vcmask 7168
    %s37 = scalar_lea.vmem %s1, 5
    %38 = vst.msk [vmem:[%s37] ss:$8 sm:$0xf] %vm36, %v35
    %v39 = vld [vmem:[#allocation0] sm:$0xf]
    %40 = vrot.lane.b32.xlu0 %v39, 122
    %v41 = vpop.permute.xlu0 %40
    %vm42 = vcmask 7168
    %s43 = scalar_lea.vmem %s1, 6
    %44 = vst.msk [vmem:[%s43] ss:$8 sm:$0xf] %vm42, %v41
    %v45 = vld [vmem:[#allocation0] sm:$0xf]
    %46 = vrot.lane.b32.xlu0 %v45, 121
    %v47 = vpop.permute.xlu0 %46
    %vm48 = vcmask 7168
    %s49 = scalar_lea.vmem %s1, 7
    %50 = vst.msk [vmem:[%s49] ss:$8 sm:$0xf] %vm48, %v47

// kernel: conv_transpose_2x_pallas.1
$region0: #{conv_transpose_2x_pallas.1}
  #allocation0 [shape = 'u32[]', space=smem, size = 0x4, offset = 0x4, fixed_abs, tag = 'smem constant byte address 0x4 - core index']
  #allocation1 [shape = 'u32[72,128]{1,0:T(1,128)}', space=vmem, size = 0x9000, scoped, tag = 'internal scratch']
  %s0 = inlined_call_operand.vmem [shape: f32[2,4,256], index: 0, kind: input, shape index: {}]
  %s1 = inlined_call_operand.vmem [shape: f32[32,16], index: 1, kind: input, shape index: {}]
  %s2 = inlined_call_operand.vmem [shape: f32[32,1], index: 2, kind: input, shape index: {}]
  %s3 = inlined_call_operand.vmem [shape: f32[3,256], index: 3, kind: input, shape index: {}]
  %s4 = inlined_call_operand.vmem [shape: f32[2,32,256], index: 4, kind: output, shape index: {}]
  %s5 = sld [smem:[#allocation0]]
  $region49: #{conv_transpose_2x_pallas.1} parent=0
    _
  %s7 = ssub.s32 1, %s5
  %s8 = scalar_select 0, %s7, %s5
  loop: start=0, step=1, limit=4
  $region2: #{conv_transpose_2x_pallas.1} parent=0 // loop_pre_header
    _
  $region3: #{conv_transpose_2x_pallas.1} parent=0 // loop_header
    %s10 = sphi 0, %s14
    %p11 = scmp.ge.s32.totalorder %s10, 4
    %s20 = sphi 0, %s22
    %s23 = sphi 0, %s20
    %s24 = sphi 0, %s23
    %s40 = sphi 0, %s24
    %s44 = sphi 0, %s44
    %s46 = sphi 0, %s44
    %s47 = sphi 0, %s46
    %s61 = sphi 0, %s47
    %s65 = sphi 0, %s65
    %s67 = sphi 0, %s65
    %s68 = sphi 0, %s67
    %s82 = sphi 0, %s68
    %s86 = sphi 0, %s86
    %s88 = sphi 0, %s86
    %s89 = sphi 0, %s88
    %s103 = sphi 0, %s89
    %s109 = sphi 0, %s111
    %s112 = sphi 0, %s109
    %s113 = sphi 0, %s112
    %s129 = sphi 0, %s113
  $region4: #{conv_transpose_2x_pallas.1} parent=0 // loop_header_branch
    %13 = sbr.rel (%p11) target = $region8
  $region5: #{conv_transpose_2x_pallas.1} parent=0 // loop_body
    %s15 = ssub.s32 %s10, 1
    %s16 = ssub.s32 %s10, 2
    %s17 = sadd.s32 %s10, 1
    %s18 = ssub.s32 %s10, %s17
    %p19 = scmp.eq.s32.totalorder %s18, 0
    %s21 = sadd.s32 %s20, 1
    %s22 = scalar_select %p19, %s20, %s21
    %p25 = pneg %p19
    %p26 = scmp.eq.s32.totalorder %s10, 1
    %p27 = por %p25, %p26
    %p28 = scmp.ne.s32.totalorder %s20, %s23
    %p29 = scmp.eq.s32.totalorder %s10, 0
    %p30 = por %p28, %p29
    %p31 = scmp.ne.s32.totalorder %s20, %s23
    %p32 = scmp.eq.s32.totalorder %s15, 1
    %p33 = por %p31, %p32
    %p34 = scmp.ne.s32.totalorder %s23, %s24
    %p35 = scmp.eq.s32.totalorder %s15, 0
    %p36 = por %p34, %p35
    %p37 = scmp.ne.s32.totalorder %s23, %s24
    %p38 = scmp.eq.s32.totalorder %s16, 1
    %p39 = por %p37, %p38
    %p41 = scmp.ne.s32.totalorder %s24, %s40
    %p42 = scmp.eq.s32.totalorder %s16, 0
    %p43 = por %p41, %p42
    %s45 = sadd.s32 %s44, 1
    %p48 = scmp.eq.s32.totalorder %s10, 1
    %p49 = scmp.ne.s32.totalorder %s44, %s46
    %p50 = scmp.eq.s32.totalorder %s10, 0
    %p51 = por %p49, %p50
    %p52 = scmp.ne.s32.totalorder %s44, %s46
    %p53 = scmp.eq.s32.totalorder %s15, 1
    %p54 = por %p52, %p53
    %p55 = scmp.ne.s32.totalorder %s46, %s47
    %p56 = scmp.eq.s32.totalorder %s15, 0
    %p57 = por %p55, %p56
    %p58 = scmp.ne.s32.totalorder %s46, %s47
    %p59 = scmp.eq.s32.totalorder %s16, 1
    %p60 = por %p58, %p59
    %p62 = scmp.ne.s32.totalorder %s47, %s61
    %p63 = scmp.eq.s32.totalorder %s16, 0
    %p64 = por %p62, %p63
    %s66 = sadd.s32 %s65, 1
    %p69 = scmp.eq.s32.totalorder %s10, 1
    %p70 = scmp.ne.s32.totalorder %s65, %s67
    %p71 = scmp.eq.s32.totalorder %s10, 0
    %p72 = por %p70, %p71
    %p73 = scmp.ne.s32.totalorder %s65, %s67
    %p74 = scmp.eq.s32.totalorder %s15, 1
    %p75 = por %p73, %p74
    %p76 = scmp.ne.s32.totalorder %s67, %s68
    %p77 = scmp.eq.s32.totalorder %s15, 0
    %p78 = por %p76, %p77
    %p79 = scmp.ne.s32.totalorder %s67, %s68
    %p80 = scmp.eq.s32.totalorder %s16, 1
    %p81 = por %p79, %p80
    %p83 = scmp.ne.s32.totalorder %s68, %s82
    %p84 = scmp.eq.s32.totalorder %s16, 0
    %p85 = por %p83, %p84
    %s87 = sadd.s32 %s86, 1
    %p90 = scmp.eq.s32.totalorder %s10, 1
    %p91 = scmp.ne.s32.totalorder %s86, %s88
    %p92 = scmp.eq.s32.totalorder %s10, 0
    %p93 = por %p91, %p92
    %p94 = scmp.ne.s32.totalorder %s86, %s88
    %p95 = scmp.eq.s32.totalorder %s15, 1
    %p96 = por %p94, %p95
    %p97 = scmp.ne.s32.totalorder %s88, %s89
    %p98 = scmp.eq.s32.totalorder %s15, 0
    %p99 = por %p97, %p98
    %p100 = scmp.ne.s32.totalorder %s88, %s89
    %p101 = scmp.eq.s32.totalorder %s16, 1
    %p102 = por %p100, %p101
    %p104 = scmp.ne.s32.totalorder %s89, %s103
    %p105 = scmp.eq.s32.totalorder %s16, 0
    %p106 = por %p104, %p105
    %s107 = ssub.s32 %s10, %s17
    %p108 = scmp.eq.s32.totalorder %s107, 0
    %s110 = sadd.s32 %s109, 1
    %s111 = scalar_select %p108, %s109, %s110
    %p114 = pneg %p108
    %p115 = scmp.eq.s32.totalorder %s10, 1
    %p116 = por %p114, %p115
    %p117 = scmp.ne.s32.totalorder %s109, %s112
    %p118 = scmp.eq.s32.totalorder %s10, 0
    %p119 = por %p117, %p118
    %p120 = scmp.ne.s32.totalorder %s109, %s112
    %p121 = scmp.eq.s32.totalorder %s15, 1
    %p122 = por %p120, %p121
    %p123 = scmp.ne.s32.totalorder %s112, %s113
    %p124 = scmp.eq.s32.totalorder %s15, 0
    %p125 = por %p123, %p124
    %p126 = scmp.ne.s32.totalorder %s112, %s113
    %p127 = scmp.eq.s32.totalorder %s16, 1
    %p128 = por %p126, %p127
    %p130 = scmp.ne.s32.totalorder %s113, %s129
    %p131 = scmp.eq.s32.totalorder %s16, 0
    %p132 = por %p130, %p131
    %p133 = scmp.le.s32.totalorder 1, %s10
    %p134 = scmp.lt.s32.totalorder %s10, 3
    %p135 = pnand %p133, %p134
    %p136 = pneg %p135
    // Predicated region
    $region9: #{conv_transpose_2x_pallas.1} parent=5 // pred_check
      _
    $region10: #{conv_transpose_2x_pallas.1} parent=5 // pred_check_branch
      %138 = sbr.rel (%p135) target = $region12
    $region11: #{conv_transpose_2x_pallas.1} parent=5 // pred_region
      %s139 = ssub.s32 %s10, 1
      // Predicated region
      $region13: #{conv_transpose_2x_pallas.1} parent=11 // pred_check
        %p140 = pneg %p57
      $region14: #{conv_transpose_2x_pallas.1} parent=11 // pred_check_branch
        %142 = sbr.rel (%p140) target = $region16
      $region15: #{conv_transpose_2x_pallas.1} parent=11 // pred_region
        _
      $region16: #{conv_transpose_2x_pallas.1} parent=11 // pred_fallthru
        _
      // Predicated region
      $region17: #{conv_transpose_2x_pallas.1} parent=11 // pred_check
        %p143 = pneg %p78
      $region18: #{conv_transpose_2x_pallas.1} parent=11 // pred_check_branch
        %145 = sbr.rel (%p143) target = $region20
      $region19: #{conv_transpose_2x_pallas.1} parent=11 // pred_region
        _
      $region20: #{conv_transpose_2x_pallas.1} parent=11 // pred_fallthru
        _
      // Predicated region
      $region21: #{conv_transpose_2x_pallas.1} parent=11 // pred_check
        %p146 = pneg %p99
      $region22: #{conv_transpose_2x_pallas.1} parent=11 // pred_check_branch
        %148 = sbr.rel (%p146) target = $region24
      $region23: #{conv_transpose_2x_pallas.1} parent=11 // pred_region
        _
      $region24: #{conv_transpose_2x_pallas.1} parent=11 // pred_fallthru
        _
    $region12: #{conv_transpose_2x_pallas.1} parent=5 // pred_fallthru
      _
    %p149 = scmp.lt.s32.totalorder %s10, 2
    // Predicated region
    $region25: #{conv_transpose_2x_pallas.1} parent=5 // pred_check
      %p150 = pneg %p149
    $region26: #{conv_transpose_2x_pallas.1} parent=5 // pred_check_branch
      %152 = sbr.rel (%p150) target = $region28
    $region27: #{conv_transpose_2x_pallas.1} parent=5 // pred_region
      // Predicated region
      $region29: #{conv_transpose_2x_pallas.1} parent=27 // pred_check
        %p153 = pneg %p30
      $region30: #{conv_transpose_2x_pallas.1} parent=27 // pred_check_branch
        %155 = sbr.rel (%p153) target = $region32
      $region31: #{conv_transpose_2x_pallas.1} parent=27 // pred_region
        %p156 = scmp.lt.s32.totalorder %s10, 1
        %s157 = scalar_select %p156, %s10, 1
        %s158 = smul.addr %s157, 2
        %s159 = smul.addr %s158, 4
        %s160 = scalar_lea.vmem %s0, %s159
      $region32: #{conv_transpose_2x_pallas.1} parent=27 // pred_fallthru
        _
    $region28: #{conv_transpose_2x_pallas.1} parent=5 // pred_fallthru
      _
    %p161 = scmp.le.s32.totalorder 1, %s10
    %p162 = scmp.lt.s32.totalorder %s10, 3
    %p163 = pnand %p161, %p162
    %p164 = pneg %p163
    // Predicated region
    $region33: #{conv_transpose_2x_pallas.1} parent=5 // pred_check
      _
    $region34: #{conv_transpose_2x_pallas.1} parent=5 // pred_check_branch
      %166 = sbr.rel (%p163) target = $region36
    $region35: #{conv_transpose_2x_pallas.1} parent=5 // pred_region
      %s167 = ssub.s32 %s10, 1
      %p168 = scmp.lt.s32.totalorder %s15, 1
      %s169 = scalar_select %p168, %s15, 1
      %s170 = smul.addr %s169, 2
      %s171 = smul.addr %s170, 4
      %s172 = scalar_lea.vmem %s0, %s171
      %p173 = pneg %p36
      %p174 = pneg %p33
      %p175 = pneg %p57
      %p176 = pneg %p54
      %p177 = pneg %p78
      %p178 = pneg %p75
      %p179 = pneg %p99
      %p180 = pneg %p96
      %p181 = pneg %p125
      %p182 = pneg %p122
      %p183 = scmp.lt.s32.totalorder %s15, 1
      %s184 = scalar_select %p183, %s15, 1
      %s185 = smul.addr %s184, 8
      %s186 = smul.addr %s185, 8
      %s187 = scalar_lea.vmem %s4, %s186
      %p188 = scmp.lt.s32.totalorder %s15, 1
      %s189 = scalar_select %p188, %s15, 1
      %s190 = smul.addr %s189, 2
      %s191 = smul.addr %s190, 4
      %s192 = scalar_lea.vmem %s0, %s191
      %p193 = scmp.lt.s32.totalorder %s15, 1
      %s194 = scalar_select %p193, %s15, 1
      %s195 = smul.addr %s194, 8
      %s196 = smul.addr %s195, 8
      %s197 = scalar_lea.vmem %s4, %s196
      %v198 = vld [vmem:[%s1] sm:$0xff]
      %v199 = vld [vmem:[%s1 + $0x8] sm:$0xff]
      %v200 = vld [vmem:[%s1 + $0x10] sm:$0xff]
      %v201 = vld [vmem:[%s1 + $0x18] sm:$0xff]
      %v202 = vld [vmem:[%s2] sm:$0xff]
      %v203 = vld [vmem:[%s2 + $0x8] sm:$0xff]
      %v204 = vld [vmem:[%s2 + $0x10] sm:$0xff]
      %v205 = vld [vmem:[%s2 + $0x18] sm:$0xff]
      %207 = vset.pattern.permute.xlu0 0
      %208 = vperm.xlu0 %207, %v202
      %v209 = vpop.permute.xlu0 %208
      %212 = vset.pattern.permute.xlu0 0
      %213 = vperm.xlu0 %212, %v203
      %v214 = vpop.permute.xlu0 %213
      %217 = vset.pattern.permute.xlu0 0
      %218 = vperm.xlu0 %217, %v204
      %v219 = vpop.permute.xlu0 %218
      %222 = vset.pattern.permute.xlu0 0
      %223 = vperm.xlu0 %222, %v205
      %v224 = vpop.permute.xlu0 %223
      %v226 = vld [vmem:[%s3] ss:$4 sm:$0x3]
      %s227 = scalar_lea.vmem %s3, 1
      %v228 = vld [vmem:[%s227] ss:$4 sm:$0x3]
      %s229 = scalar_lea.vmem %s3, 2
      %v230 = vld [vmem:[%s229] ss:$4 sm:$0x3]
      %v231 = vld [vmem:[%s192] sm:$0xff]
      %233 = vst [vmem:[#allocation1] ss:$2 sm:$0xff] %v231
      %v234 = vld.sshfl [vmem:[#allocation1] sm:$0xff pattern:$0x75316420]
      %v235 = vld.sshfl [vmem:[#allocation1 + $0x8] sm:$0xff pattern:$0x75316420]
      %236 = vrot.lane.b32.xlu0 %v234, 127
      %v237 = vpop.permute.xlu0 %236
      %238 = vrot.lane.b32.xlu0 %v235, 127
      %v239 = vpop.permute.xlu0 %238
      %vm240 = vcmask 1039360
      %v241 = vsel %vm240, %v237, %v239
      %244 = vst [vmem:[#allocation1] ss:$2 sm:$0xff] %v231
      %v245 = vld.sshfl [vmem:[#allocation1] sm:$0xff pattern:$0x75316420]
      %246 = vrot.lane.b32.xlu0 %v245, 127
      %v247 = vpop.permute.xlu0 %246
      %v249 = vsel %vm240, %v239, %v247
      %v251 = vperm.slane %v226, 0
      %v252 = vperm.slane %v226, 1
      %v255 = vmul.f32 %v241, %v251
      %v256 = vmul.f32 %v249, %v252
      %257 = vst [vmem:[#allocation1] ss:$2 sm:$0xff] %v231
      %v258 = vld.sshfl [vmem:[#allocation1] sm:$0xff pattern:$0x75316420]
      %v259 = vld.sshfl [vmem:[#allocation1 + $0x8] sm:$0xff pattern:$0x75316420]
      %260 = vrot.lane.b32.xlu0 %v258, 112
      %v261 = vpop.permute.xlu0 %260
      %262 = vrot.lane.b32.xlu0 %v259, 112
      %v263 = vpop.permute.xlu0 %262
      %vm264 = vcmask 916480
      %v265 = vsel %vm264, %v261, %v263
      %268 = vst [vmem:[#allocation1] ss:$2 sm:$0xff] %v231
      %v269 = vld.sshfl [vmem:[#allocation1] sm:$0xff pattern:$0x75316420]
      %270 = vrot.lane.b32.xlu0 %v269, 112
      %v271 = vpop.permute.xlu0 %270
      %v273 = vsel %vm264, %v263, %v271
      %v275 = vperm.slane %v228, 0
      %v276 = vperm.slane %v228, 1
      %v279 = vmul.f32 %v265, %v275
      %v280 = vmul.f32 %v273, %v276
      %281 = vst [vmem:[#allocation1] ss:$2 sm:$0xff] %v231
      %v282 = vld.sshfl [vmem:[#allocation1] sm:$0xff pattern:$0x75316420]
      %v283 = vld.sshfl [vmem:[#allocation1 + $0x8] sm:$0xff pattern:$0x75316420]
      %284 = vrot.lane.b32.xlu0 %v282, 111
      %v285 = vpop.permute.xlu0 %284
      %286 = vrot.lane.b32.xlu0 %v283, 111
      %v287 = vpop.permute.xlu0 %286
      %vm288 = vcmask 908288
      %v289 = vsel %vm288, %v285, %v287
      %292 = vst [vmem:[#allocation1] ss:$2 sm:$0xff] %v231
      %v293 = vld.sshfl [vmem:[#allocation1] sm:$0xff pattern:$0x75316420]
      %294 = vrot.lane.b32.xlu0 %v293, 111
      %v295 = vpop.permute.xlu0 %294
      %v297 = vsel %vm288, %v287, %v295
      %v299 = vperm.slane %v230, 0
      %v300 = vperm.slane %v230, 1
      %v303 = vmul.f32 %v289, %v299
      %v304 = vmul.f32 %v297, %v300
      %305 = vst [vmem:[#allocation1] ss:$2 sm:$0xff] %v231
      %v306 = vld.sshfl [vmem:[#allocation1] sm:$0xff pattern:$0x75316420]
      %v307 = vld.sshfl [vmem:[#allocation1 + $0x8] sm:$0xff pattern:$0x75316420]
      %v312 = vrot.slane %v255, 4
      %v313 = vrot.slane %v256, 4
      %v318 = vrot.slane %v303, 4
      %v319 = vrot.slane %v304, 4
      %vm322 = vcmask 1043456
      %v323 = vsel %vm322, %v306, %v312
      %v324 = vsel %vm322, %v307, %v313
      %v325 = vsel %vm322, %v279, %v318
      %v326 = vsel %vm322, %v280, %v319
      %vm327 = vcmask 130048
      %v329 = vsel %vm327, %v198, 0
      %v332 = vsel %vm327, %v199, 0
      %v335 = vsel %vm327, %v200, 0
      %v338 = vsel %vm327, %v201, 0
      %340 = vmatpush.msra.mxu0 0.0
      %341 = vmatpush.msra.mxu0 0.0
      %342 = vmatpush.msra.mxu0 0.0
      %343 = vmatpush.msra.mxu0 0.0
      %344 = vmatpush.msra.mxu0 0.0
      %345 = vmatpush.msra.mxu0 0.0
      %346 = vmatpush.msra.mxu0 0.0
      %347 = vmatpush.msra.mxu0 0.0
      %348 = vmatpush.msra.mxu0 0.0
      %349 = vmatpush.msra.mxu0 0.0
      %350 = vmatpush.msra.mxu0 0.0
      %351 = vmatpush.msra.mxu0 0.0
      %352 = vmatpush.msra.mxu0 0.0
      %353 = vmatpush.msra.mxu0 0.0
      %354 = vmatpush.msra.mxu0 %v325
      %355 = vmatpush.msra.mxu0 %v323
      %356 = vmatmul.f32.gmra.mxu0 %v329
      %v357 = vpop.f32.mrf.mxu0
      %v358 = vadd.f32 %v209, %v357
      %359 = vmatmul.f32.gmra.mxu0 %v332
      %v360 = vpop.f32.mrf.mxu0
      %v361 = vadd.f32 %v214, %v360
      %362 = vmatmul.f32.gmra.mxu0 %v335
      %v363 = vpop.f32.mrf.mxu0
      %v364 = vadd.f32 %v219, %v363
      %365 = vmatmul.f32.gmra.mxu0 %v338
      %v366 = vpop.f32.mrf.mxu0
      %v367 = vadd.f32 %v224, %v366
      %368 = vdwg.mxu0
      %369 = vmatpush.msra.mxu0 0.0
      %370 = vmatpush.msra.mxu0 0.0
      %371 = vmatpush.msra.mxu0 0.0
      %372 = vmatpush.msra.mxu0 0.0
      %373 = vmatpush.msra.mxu0 0.0
      %374 = vmatpush.msra.mxu0 0.0
      %375 = vmatpush.msra.mxu0 0.0
      %376 = vmatpush.msra.mxu0 0.0
      %377 = vmatpush.msra.mxu0 0.0
      %378 = vmatpush.msra.mxu0 0.0
      %379 = vmatpush.msra.mxu0 0.0
      %380 = vmatpush.msra.mxu0 0.0
      %381 = vmatpush.msra.mxu0 0.0
      %382 = vmatpush.msra.mxu0 0.0
      %383 = vmatpush.msra.mxu0 %v326
      %384 = vmatpush.msra.mxu0 %v324
      %385 = vmatmul.f32.gmra.mxu0 %v329
      %v386 = vpop.f32.mrf.mxu0
      %v387 = vadd.f32 %v209, %v386
      %388 = vmatmul.f32.gmra.mxu0 %v332
      %v389 = vpop.f32.mrf.mxu0
      %v390 = vadd.f32 %v214, %v389
      %391 = vmatmul.f32.gmra.mxu0 %v335
      %v392 = vpop.f32.mrf.mxu0
      %v393 = vadd.f32 %v219, %v392
      %394 = vmatmul.f32.gmra.mxu0 %v338
      %v395 = vpop.f32.mrf.mxu0
      %v396 = vadd.f32 %v224, %v395
      %397 = vdwg.mxu0
      %398 = vst [vmem:[%s197] sm:$0xff] %v358
      %399 = vst [vmem:[%s197 + $0x8] sm:$0xff] %v387
      %400 = vst [vmem:[%s197 + $0x10] sm:$0xff] %v361
      %401 = vst [vmem:[%s197 + $0x18] sm:$0xff] %v390
      %402 = vst [vmem:[%s197 + $0x20] sm:$0xff] %v364
      %403 = vst [vmem:[%s197 + $0x28] sm:$0xff] %v393
      %404 = vst [vmem:[%s197 + $0x30] sm:$0xff] %v367
      %405 = vst [vmem:[%s197 + $0x38] sm:$0xff] %v396
      %p406 = scmp.lt.s32.totalorder %s15, 1
      %s407 = scalar_select %p406, %s15, 1
      %s408 = smul.addr %s407, 8
      %s409 = smul.addr %s408, 8
      %s410 = scalar_lea.vmem %s4, %s409
      // Predicated region
      $region37: #{conv_transpose_2x_pallas.1} parent=35 // pred_check
        %p411 = pneg %p122
      $region38: #{conv_transpose_2x_pallas.1} parent=35 // pred_check_branch
        %413 = sbr.rel (%p411) target = $region40
      $region39: #{conv_transpose_2x_pallas.1} parent=35 // pred_region
        _
      $region40: #{conv_transpose_2x_pallas.1} parent=35 // pred_fallthru
        _
    $region36: #{conv_transpose_2x_pallas.1} parent=5 // pred_fallthru
      _
    %p414 = scmp.le.s32.totalorder 2, %s10
    // Predicated region
    $region41: #{conv_transpose_2x_pallas.1} parent=5 // pred_check
      %p415 = pneg %p414
    $region42: #{conv_transpose_2x_pallas.1} parent=5 // pred_check_branch
      %417 = sbr.rel (%p415) target = $region44
    $region43: #{conv_transpose_2x_pallas.1} parent=5 // pred_region
      %s418 = ssub.s32 %s10, 2
      // Predicated region
      $region45: #{conv_transpose_2x_pallas.1} parent=43 // pred_check
        %p419 = pneg %p128
      $region46: #{conv_transpose_2x_pallas.1} parent=43 // pred_check_branch
        %421 = sbr.rel (%p419) target = $region48
      $region47: #{conv_transpose_2x_pallas.1} parent=43 // pred_region
        %p422 = scmp.lt.s32.totalorder %s16, 1
        %s423 = scalar_select %p422, %s16, 1
        %s424 = smul.addr %s423, 8
        %s425 = smul.addr %s424, 8
        %s426 = scalar_lea.vmem %s4, %s425
      $region48: #{conv_transpose_2x_pallas.1} parent=43 // pred_fallthru
        _
    $region44: #{conv_transpose_2x_pallas.1} parent=5 // pred_fallthru
      _
  $region6: #{conv_transpose_2x_pallas.1} parent=0 // loop_footer
    %s14 = sadd.s32 1, %s10
  $region7: #{conv_transpose_2x_pallas.1} parent=0 // loop_footer_branch
    %9 = sbr.rel target = $region3
  $region8: #{conv_transpose_2x_pallas.1} parent=0 // loop_exit
    _

</llo_original>
